<compile_context>
chip_gen: v6e
topology: v6e:2x2x1
jax: 0.10.0
libtpu: 0.0.40
codegen_flags: <defaults>
</compile_context>

<pallas_src>
import functools

import jax
import jax.numpy as jnp
from jax import lax
from jax.experimental import pallas as pl
from jax.experimental.pallas import tpu as pltpu


def _round_up(v, m):
    return (v + m - 1) // m * m


def fclayer_kernel(x_ref, w_ref, b_ref, out_ref, *,
                   dims, offsets, n_rows, block_rows):
    in_f, h1_f, h2_f, c_f = dims
    off2, off3 = offsets                       # static row offsets of W2 / W3_eff in the slab

    i = pl.program_id(0)

    @pl.when(i == 0)
    def _init():
        out_ref[...] = jnp.zeros_like(out_ref)

    x = x_ref[...]                             # (tm, in_f), compute dtype
    cdt = x.dtype

    # Static slices out of the packed weight slab / bias array (zero-cost views).
    w1 = w_ref[0:in_f, 0:h1_f]
    w2 = w_ref[off2:off2 + h1_f, 0:h2_f]
    w3 = w_ref[off3:off3 + h2_f, 0:c_f]        # already holds aspect @ W3
    b1 = b_ref[0:1, 0:h1_f]
    b2 = b_ref[1:2, 0:h2_f]
    b3 = b_ref[2:3, 0:c_f]

    # fc1 / fc2 / (aspect-folded) fc3: MXU matmuls with f32 accumulation;
    # bias + relu stay f32.
    h1 = jnp.maximum(jnp.dot(x, w1, preferred_element_type=jnp.float32) + b1, 0.0)
    h2 = jnp.maximum(
        jnp.dot(h1.astype(cdt), w2, preferred_element_type=jnp.float32) + b2, 0.0)
    h3 = jnp.maximum(
        jnp.dot(h2.astype(cdt), w3, preferred_element_type=jnp.float32) + b3, 0.0)

    if n_rows % block_rows != 0:               # static: mask only if a partial tile exists
        row_ids = i * block_rows + lax.broadcasted_iota(jnp.int32, (block_rows, 1), 0)
        h3 = jnp.where(row_ids < n_rows, h3, 0.0)

    # Accumulate the (unnormalized) mean-pool directly in the resident output block.
    out_ref[...] += jnp.sum(h3, axis=0, keepdims=True)

    @pl.when(i == pl.num_programs(0) - 1)
    def _finalize():
        pooled = out_ref[...] * (1.0 / n_rows)                  # mean over dim 0, keepdim
        m = jnp.max(pooled, axis=1, keepdims=True)
        e = jnp.exp(pooled - m)
        s = jnp.sum(e, axis=1, keepdims=True)
        r = pl.reciprocal(s, approx=True)                       # EUP slot
        r = r * (2.0 - s * r)                                   # one Newton step -> full f32
        out_ref[...] = e * r


def fclayer_forward(x, aspect, w1, b1, w2, b2, w3, b3, *,
                    compute_dtype=jnp.float32, block_rows=128):
    """FCLayer forward.  Linear weights are given pre-transposed as (in, out)
    and biases as (1, out), so x @ W + b  ==  torch's  x @ W.T + b."""
    n, in_f = x.shape
    h1_f = w1.shape[1]
    h2_f = w2.shape[1]
    c_f = w3.shape[1]

    # Fold the aspect matmul into fc3:
    #   relu((h2 @ aspect) @ W3 + b3) == relu(h2 @ (aspect @ W3) + b3).
    # Weight-only work; in a real model this is computed once and reused.
    w3_eff = jnp.dot(aspect, w3, preferred_element_type=jnp.float32)   # (h2_f, c_f)

    # Pack weights into one padded slab and biases into one (3, width) array.
    itemsize = jnp.dtype(compute_dtype).itemsize
    pack = max(8, 32 // itemsize)                      # sublane packing: 8 f32, 16 bf16
    width = _round_up(max(h1_f, h2_f, c_f), 128)       # lane-dense slab
    r1 = _round_up(in_f, pack)
    r2 = _round_up(h1_f, pack)
    r3 = _round_up(h2_f, pack)

    def _pad(a, rows, cols):
        return jnp.pad(a, ((0, rows - a.shape[0]), (0, cols - a.shape[1])))

    w_slab = jnp.concatenate(
        [_pad(w1, r1, width), _pad(w2, r2, width), _pad(w3_eff, r3, width)],
        axis=0).astype(compute_dtype)
    b_all = jnp.concatenate(
        [_pad(b1, 1, width), _pad(b2, 1, width), _pad(b3, 1, width)],
        axis=0).astype(jnp.float32)                    # epilogue stays f32

    tm = min(block_rows, _round_up(n, pack))
    grid = (pl.cdiv(n, tm),)

    kernel = functools.partial(
        fclayer_kernel, dims=(in_f, h1_f, h2_f, c_f),
        offsets=(r1, r1 + r2), n_rows=n, block_rows=tm)

    cost = pl.CostEstimate(
        flops=2 * n * (in_f * h1_f + h1_f * h2_f + h2_f * c_f),
        transcendentals=c_f + 1,
        bytes_accessed=int(n * in_f * itemsize + w_slab.size * itemsize
                           + b_all.size * 4 + c_f * 4))

    return pl.pallas_call(
        kernel,
        out_shape=jax.ShapeDtypeStruct((1, c_f), jnp.float32),
        grid_spec=pltpu.PrefetchScalarGridSpec(
            num_scalar_prefetch=0,
            grid=grid,
            in_specs=[
                pl.BlockSpec((tm, in_f), lambda i: (i, 0)),      # row tiles of x
                pl.BlockSpec(w_slab.shape, lambda i: (0, 0)),    # VMEM-resident weights
                pl.BlockSpec(b_all.shape, lambda i: (0, 0)),     # VMEM-resident biases
            ],
            out_specs=pl.BlockSpec((1, c_f), lambda i: (0, 0)),  # resident accumulator
        ),
        compiler_params=pltpu.CompilerParams(
            # The row axis feeds the mean-pool reduction -> must stay "arbitrary".
            dimension_semantics=("arbitrary",)),
        cost_estimate=cost,
    )(x.astype(compute_dtype), w_slab, b_all)


def _init_linear(key, in_features, out_features):
    """Deterministic nn.Linear-style init; returns W as (in, out), b as (1, out)."""
    kw, kb = jax.random.split(key)
    bound = 1.0 / (in_features ** 0.5)
    w = jax.random.uniform(kw, (in_features, out_features), jnp.float32, -bound, bound)
    b = jax.random.uniform(kb, (1, out_features), jnp.float32, -bound, bound)
    return w, b


def _reference(x, aspect, w1, b1, w2, b2, w3, b3):
    h1 = jax.nn.relu(x @ w1 + b1)
    h2 = jax.nn.relu(h1 @ w2 + b2)
    v = h2 @ aspect
    h3 = jax.nn.relu(v @ w3 + b3)
    return jax.nn.softmax(jnp.mean(h3, axis=0, keepdims=True), axis=1)


if __name__ == "__main__":
    # Shapes consistent with the module's forward; the N rows are mean-pooled.
    input_size = 32
    hidden_size1 = 64
    hidden_size2 = 32
    num_aspect_tags = 16
    num_sentiment_classes = 8

    key = jax.random.PRNGKey(0)
    kx, ka, k1, k2, k3 = jax.random.split(key, 5)

    aspect = jax.random.normal(ka, (hidden_size2, num_aspect_tags), jnp.float32)
    w1, b1 = _init_linear(k1, input_size, hidden_size1)
    w2, b2 = _init_linear(k2, hidden_size1, hidden_size2)
    w3, b3 = _init_linear(k3, num_aspect_tags, num_sentiment_classes)

    # f32 path, N divisible by the row tile (2 grid steps, resident accumulator).
    x = jax.random.normal(kx, (256, input_size), jnp.float32)
    ref = _reference(x, aspect, w1, b1, w2, b2, w3, b3)
    out = jax.block_until_ready(
        fclayer_forward(x, aspect, w1, b1, w2, b2, w3, b3,
                        compute_dtype=jnp.float32, block_rows=128))
    assert out.shape == (1, num_sentiment_classes)
    assert jnp.allclose(out, ref, atol=1e-4, rtol=1e-4), float(jnp.abs(out - ref).max())

    # f32 path with a partial last row tile (exercises the in-kernel mask).
    x_odd = x[:200]
    ref_odd = _reference(x_odd, aspect, w1, b1, w2, b2, w3, b3)
    out_odd = jax.block_until_ready(
        fclayer_forward(x_odd, aspect, w1, b1, w2, b2, w3, b3,
                        compute_dtype=jnp.float32, block_rows=128))
    assert jnp.allclose(out_odd, ref_odd, atol=1e-4, rtol=1e-4), \
        float(jnp.abs(out_odd - ref_odd).max())

    # bf16 fast path (f32 accumulation) — native MXU dtype on v6e/v7x.
    out_bf16 = jax.block_until_ready(
        fclayer_forward(x, aspect, w1, b1, w2, b2, w3, b3,
                        compute_dtype=jnp.bfloat16, block_rows=128))
    assert out_bf16.shape == (1, num_sentiment_classes)
    assert jnp.allclose(out_bf16, ref, atol=5e-2, rtol=5e-2)

    print("KERNEL_OK")
</pallas_src>

<mosaic_0001>
module attributes {stable_mosaic.version = 11 : i64} {
  func.func @fclayer_kernel(%arg0: i32, %arg1: memref<128x32xf32, #tpu.memory_space<vmem>>, %arg2: memref<128x128xf32, #tpu.memory_space<vmem>>, %arg3: memref<3x128xf32, #tpu.memory_space<vmem>>, %arg4: memref<1x8xf32, #tpu.memory_space<vmem>>) attributes {dimension_semantics = [#tpu.dimension_semantics<arbitrary>], iteration_bounds = array<i64: 2>, scalar_prefetch = 0 : i64, scratch_operands = 0 : i64, tpu.core_type = #tpu.core_type<tc>, window_params = [{transform_indices = @transform_0, window_bounds = array<i64: 128, 32>}, {pipeline_mode = #tpu.pipeline_mode<synchronous>, transform_indices = @transform_1, window_bounds = array<i64: 128, 128>}, {pipeline_mode = #tpu.pipeline_mode<synchronous>, transform_indices = @transform_2, window_bounds = array<i64: 3, 128>}, {pipeline_mode = #tpu.pipeline_mode<synchronous>, transform_indices = @transform_3, window_bounds = array<i64: 1, 8>}]} {
    %c0_i32 = arith.constant 0 : i32
    %0 = arith.cmpi eq, %arg0, %c0_i32 : i32
    %1 = arith.extui %0 : i1 to i32
    %c0_i32_0 = arith.constant 0 : i32
    %2 = arith.cmpi ne, %1, %c0_i32_0 : i32
    scf.if %2 {
      %cst_21 = arith.constant 0.000000e+00 : f32
      %33 = vector.broadcast %cst_21 : f32 to vector<1x8xf32>
      %c0_22 = arith.constant 0 : index
      %c0_23 = arith.constant 0 : index
      %34 = vector.load %arg4[%c0_22, %c0_23] : memref<1x8xf32, #tpu.memory_space<vmem>>, vector<1x8xf32>
      tpu.vector_store %arg4[%c0_22, %c0_23], %33 {strides = array<i32>} : memref<1x8xf32, #tpu.memory_space<vmem>>, vector<1x8xf32>,
    } else {
    }
    %c0 = arith.constant 0 : index
    %c0_1 = arith.constant 0 : index
    %3 = vector.load %arg1[%c0, %c0_1] : memref<128x32xf32, #tpu.memory_space<vmem>>, vector<128x32xf32>
    %c0_2 = arith.constant 0 : index
    %c0_3 = arith.constant 0 : index
    %4 = vector.load %arg2[%c0_2, %c0_3] : memref<128x128xf32, #tpu.memory_space<vmem>>, vector<32x64xf32>
    %c32 = arith.constant 32 : index
    %c0_4 = arith.constant 0 : index
    %5 = vector.load %arg2[%c32, %c0_4] : memref<128x128xf32, #tpu.memory_space<vmem>>, vector<64x32xf32>
    %c96 = arith.constant 96 : index
    %c0_5 = arith.constant 0 : index
    %6 = vector.load %arg2[%c96, %c0_5] : memref<128x128xf32, #tpu.memory_space<vmem>>, vector<32x8xf32>
    %c0_6 = arith.constant 0 : index
    %c0_7 = arith.constant 0 : index
    %7 = vector.load %arg3[%c0_6, %c0_7] : memref<3x128xf32, #tpu.memory_space<vmem>>, vector<1x64xf32>
    %c1 = arith.constant 1 : index
    %c0_8 = arith.constant 0 : index
    %8 = vector.load %arg3[%c1, %c0_8] : memref<3x128xf32, #tpu.memory_space<vmem>>, vector<1x32xf32>
    %c2 = arith.constant 2 : index
    %c0_9 = arith.constant 0 : index
    %9 = vector.load %arg3[%c2, %c0_9] : memref<3x128xf32, #tpu.memory_space<vmem>>, vector<1x8xf32>
    %cst = arith.constant dense<0.000000e+00> : vector<128x64xf32>
    %10 = tpu.matmul %3, %4, %cst {dimension_numbers = #tpu.dot_dimension_numbers<[1], [0], [0], [1], [0, 0, 1, 1], [], []>} : vector<128x32xf32>, vector<32x64xf32>, vector<128x64xf32> -> vector<128x64xf32>
    %11 = vector.broadcast %7 : vector<1x64xf32> to vector<128x64xf32>
    %12 = arith.addf %10, %11 : vector<128x64xf32>
    %cst_10 = arith.constant 0.000000e+00 : f32
    %13 = vector.broadcast %cst_10 : f32 to vector<128x64xf32>
    %14 = arith.maximumf %12, %13 : vector<128x64xf32>
    %cst_11 = arith.constant dense<0.000000e+00> : vector<128x32xf32>
    %15 = tpu.matmul %14, %5, %cst_11 {dimension_numbers = #tpu.dot_dimension_numbers<[1], [0], [0], [1], [0, 0, 1, 1], [], []>} : vector<128x64xf32>, vector<64x32xf32>, vector<128x32xf32> -> vector<128x32xf32>
    %16 = vector.broadcast %8 : vector<1x32xf32> to vector<128x32xf32>
    %17 = arith.addf %15, %16 : vector<128x32xf32>
    %cst_12 = arith.constant 0.000000e+00 : f32
    %18 = vector.broadcast %cst_12 : f32 to vector<128x32xf32>
    %19 = arith.maximumf %17, %18 : vector<128x32xf32>
    %cst_13 = arith.constant dense<0.000000e+00> : vector<128x8xf32>
    %20 = tpu.matmul %19, %6, %cst_13 {dimension_numbers = #tpu.dot_dimension_numbers<[1], [0], [0], [1], [0, 0, 1, 1], [], []>} : vector<128x32xf32>, vector<32x8xf32>, vector<128x8xf32> -> vector<128x8xf32>
    %21 = vector.broadcast %9 : vector<1x8xf32> to vector<128x8xf32>
    %22 = arith.addf %20, %21 : vector<128x8xf32>
    %cst_14 = arith.constant 0.000000e+00 : f32
    %23 = vector.broadcast %cst_14 : f32 to vector<128x8xf32>
    %24 = arith.maximumf %22, %23 : vector<128x8xf32>
    %c0_15 = arith.constant 0 : index
    %c0_16 = arith.constant 0 : index
    %25 = vector.load %arg4[%c0_15, %c0_16] : memref<1x8xf32, #tpu.memory_space<vmem>>, vector<1x8xf32>
    %cst_17 = arith.constant dense<0.000000e+00> : vector<8xf32>
    %26 = vector.multi_reduction <add>, %24, %cst_17 [0] : vector<128x8xf32> to vector<8xf32>
    %27 = vector.shape_cast %26 : vector<8xf32> to vector<1x8xf32>
    %28 = arith.addf %25, %27 : vector<1x8xf32>
    %c0_18 = arith.constant 0 : index
    %c0_19 = arith.constant 0 : index
    %29 = vector.load %arg4[%c0_18, %c0_19] : memref<1x8xf32, #tpu.memory_space<vmem>>, vector<1x8xf32>
    tpu.vector_store %arg4[%c0_18, %c0_19], %28 {strides = array<i32>} : memref<1x8xf32, #tpu.memory_space<vmem>>, vector<1x8xf32>,
    %c1_i32 = arith.constant 1 : i32
    %30 = arith.cmpi eq, %arg0, %c1_i32 : i32
    %31 = arith.extui %30 : i1 to i32
    %c0_i32_20 = arith.constant 0 : i32
    %32 = arith.cmpi ne, %31, %c0_i32_20 : i32
    scf.if %32 {
      %c0_21 = arith.constant 0 : index
      %c0_22 = arith.constant 0 : index
      %33 = vector.load %arg4[%c0_21, %c0_22] : memref<1x8xf32, #tpu.memory_space<vmem>>, vector<1x8xf32>
      %cst_23 = arith.constant 3.906250e-03 : f32
      %34 = vector.broadcast %cst_23 : f32 to vector<1x8xf32>
      %35 = arith.mulf %33, %34 : vector<1x8xf32>
      %cst_24 = arith.constant dense<0xFF800000> : vector<1xf32>
      %36 = vector.multi_reduction <maximumf>, %35, %cst_24 [1] : vector<1x8xf32> to vector<1xf32>
      %37 = vector.shape_cast %36 : vector<1xf32> to vector<1x1xf32>
      %38 = vector.broadcast %37 : vector<1x1xf32> to vector<1x8xf32>
      %39 = arith.subf %35, %38 : vector<1x8xf32>
      %40 = math.exp %39 : vector<1x8xf32>
      %cst_25 = arith.constant dense<0.000000e+00> : vector<1xf32>
      %41 = vector.multi_reduction <add>, %40, %cst_25 [1] : vector<1x8xf32> to vector<1xf32>
      %42 = vector.shape_cast %41 : vector<1xf32> to vector<1x1xf32>
      %43 = tpu.reciprocal %42 {approx = true} : vector<1x1xf32> -> vector<1x1xf32>
      %44 = arith.mulf %42, %43 : vector<1x1xf32>
      %cst_26 = arith.constant 2.000000e+00 : f32
      %45 = vector.broadcast %cst_26 : f32 to vector<1x1xf32>
      %46 = arith.subf %45, %44 : vector<1x1xf32>
      %47 = arith.mulf %43, %46 : vector<1x1xf32>
      %48 = vector.broadcast %47 : vector<1x1xf32> to vector<1x8xf32>
      %49 = arith.mulf %40, %48 : vector<1x8xf32>
      %c0_27 = arith.constant 0 : index
      %c0_28 = arith.constant 0 : index
      %50 = vector.load %arg4[%c0_27, %c0_28] : memref<1x8xf32, #tpu.memory_space<vmem>>, vector<1x8xf32>
      tpu.vector_store %arg4[%c0_27, %c0_28], %49 {strides = array<i32>} : memref<1x8xf32, #tpu.memory_space<vmem>>, vector<1x8xf32>,
    } else {
    }
    return
  }
  func.func @transform_0(%arg0: i32) -> (i32, i32) {
    %c0_i32 = arith.constant 0 : i32
    %c0_i32_0 = arith.constant 0 : i32
    return %arg0, %c0_i32 : i32, i32
  }
  func.func @transform_1(%arg0: i32) -> (i32, i32) {
    %c0_i32 = arith.constant 0 : i32
    %c0_i32_0 = arith.constant 0 : i32
    %c0_i32_1 = arith.constant 0 : i32
    return %c0_i32, %c0_i32_0 : i32, i32
  }
  func.func @transform_2(%arg0: i32) -> (i32, i32) {
    %c0_i32 = arith.constant 0 : i32
    %c0_i32_0 = arith.constant 0 : i32
    %c0_i32_1 = arith.constant 0 : i32
    return %c0_i32, %c0_i32_0 : i32, i32
  }
  func.func @transform_3(%arg0: i32) -> (i32, i32) {
    %c0_i32 = arith.constant 0 : i32
    %c0_i32_0 = arith.constant 0 : i32
    %c0_i32_1 = arith.constant 0 : i32
    return %c0_i32, %c0_i32_0 : i32, i32
  }
}

</mosaic_0001>

<llo_original>
// kernel: tpu_custom_call.1
$region0: #{tpu_custom_call.1}
  #allocation0 [shape = 'u32[]', space=smem, size = 0x4, offset = 0x4, fixed_abs, tag = 'smem constant byte address 0x4 - core index']
  #allocation1 [shape = 'u32[144,128]{1,0:T(1,128)}', space=vmem, size = 0x12000, scoped, tag = 'internal scratch']
  %s0 = inlined_call_operand.vmem [shape: f32[256,32], index: 0, kind: input, shape index: {}]
  %s1 = inlined_call_operand.vmem [shape: f32[128,128], index: 1, kind: input, shape index: {}]
  %s2 = inlined_call_operand.vmem [shape: f32[3,128], index: 2, kind: input, shape index: {}]
  %s3 = inlined_call_operand.hbm [shape: f32[1,8], index: 3, kind: output, shape index: {}]
  %s4 = sld [smem:[#allocation0]]
  $region53: #{tpu_custom_call.1} parent=0
    _
  %s6 = ssub.s32 1, %s4
  %s7 = scalar_select 0, %s6, %s4
  $region1: #{tpu_custom_call.1} parent=0
    #allocation2 [shape = 'u8[512]{0}', space=vmem, size = 0x400, scoped, tag = 'output window, operand 0, single buffered']
    #allocation3 [shape = 's32[2]{0}', space=sflag, size = 0x8, scoped, tag = 'scoped memory for tpu_custom_call.1']
    %8 = vsyncpa [#allocation3], 0
    loop: start=0, step=1, limit=4
    $region2: #{tpu_custom_call.1} parent=1 // loop_pre_header
      _
    $region3: #{tpu_custom_call.1} parent=1 // loop_header
      %s10 = sphi 0, %s14
      %p11 = scmp.ge.s32.totalorder %s10, 4
      %s20 = sphi 0, %s22
      %s23 = sphi 0, %s20
      %s24 = sphi 0, %s23
      %s40 = sphi 0, %s24
      %s44 = sphi 0, %s44
      %s46 = sphi 0, %s44
      %s47 = sphi 0, %s46
      %s61 = sphi 0, %s47
      %s65 = sphi 0, %s65
      %s67 = sphi 0, %s65
      %s68 = sphi 0, %s67
      %s82 = sphi 0, %s68
      %s86 = sphi 0, %s86
      %s88 = sphi 0, %s86
      %s89 = sphi 0, %s88
      %s103 = sphi 0, %s89
    $region4: #{tpu_custom_call.1} parent=1 // loop_header_branch
      %13 = sbr.rel (%p11) target = $region8
    $region5: #{tpu_custom_call.1} parent=1 // loop_body
      %s15 = ssub.s32 %s10, 1
      %s16 = ssub.s32 %s10, 2
      %s17 = sadd.s32 %s10, 1
      %s18 = ssub.s32 %s10, %s17
      %p19 = scmp.eq.s32.totalorder %s18, 0
      %s21 = sadd.s32 %s20, 1
      %s22 = scalar_select %p19, %s20, %s21
      %p25 = pneg %p19
      %p26 = scmp.eq.s32.totalorder %s10, 1
      %p27 = por %p25, %p26
      %p28 = scmp.ne.s32.totalorder %s20, %s23
      %p29 = scmp.eq.s32.totalorder %s10, 0
      %p30 = por %p28, %p29
      %p31 = scmp.ne.s32.totalorder %s20, %s23
      %p32 = scmp.eq.s32.totalorder %s15, 1
      %p33 = por %p31, %p32
      %p34 = scmp.ne.s32.totalorder %s23, %s24
      %p35 = scmp.eq.s32.totalorder %s15, 0
      %p36 = por %p34, %p35
      %p37 = scmp.ne.s32.totalorder %s23, %s24
      %p38 = scmp.eq.s32.totalorder %s16, 1
      %p39 = por %p37, %p38
      %p41 = scmp.ne.s32.totalorder %s24, %s40
      %p42 = scmp.eq.s32.totalorder %s16, 0
      %p43 = por %p41, %p42
      %s45 = sadd.s32 %s44, 1
      %p48 = scmp.eq.s32.totalorder %s10, 1
      %p49 = scmp.ne.s32.totalorder %s44, %s46
      %p50 = scmp.eq.s32.totalorder %s10, 0
      %p51 = por %p49, %p50
      %p52 = scmp.ne.s32.totalorder %s44, %s46
      %p53 = scmp.eq.s32.totalorder %s15, 1
      %p54 = por %p52, %p53
      %p55 = scmp.ne.s32.totalorder %s46, %s47
      %p56 = scmp.eq.s32.totalorder %s15, 0
      %p57 = por %p55, %p56
      %p58 = scmp.ne.s32.totalorder %s46, %s47
      %p59 = scmp.eq.s32.totalorder %s16, 1
      %p60 = por %p58, %p59
      %p62 = scmp.ne.s32.totalorder %s47, %s61
      %p63 = scmp.eq.s32.totalorder %s16, 0
      %p64 = por %p62, %p63
      %s66 = sadd.s32 %s65, 1
      %p69 = scmp.eq.s32.totalorder %s10, 1
      %p70 = scmp.ne.s32.totalorder %s65, %s67
      %p71 = scmp.eq.s32.totalorder %s10, 0
      %p72 = por %p70, %p71
      %p73 = scmp.ne.s32.totalorder %s65, %s67
      %p74 = scmp.eq.s32.totalorder %s15, 1
      %p75 = por %p73, %p74
      %p76 = scmp.ne.s32.totalorder %s67, %s68
      %p77 = scmp.eq.s32.totalorder %s15, 0
      %p78 = por %p76, %p77
      %p79 = scmp.ne.s32.totalorder %s67, %s68
      %p80 = scmp.eq.s32.totalorder %s16, 1
      %p81 = por %p79, %p80
      %p83 = scmp.ne.s32.totalorder %s68, %s82
      %p84 = scmp.eq.s32.totalorder %s16, 0
      %p85 = por %p83, %p84
      %s87 = sadd.s32 %s86, 1
      %p90 = scmp.eq.s32.totalorder %s10, 1
      %p91 = scmp.ne.s32.totalorder %s86, %s88
      %p92 = scmp.eq.s32.totalorder %s10, 0
      %p93 = por %p91, %p92
      %p94 = scmp.ne.s32.totalorder %s86, %s88
      %p95 = scmp.eq.s32.totalorder %s15, 1
      %p96 = por %p94, %p95
      %p97 = scmp.ne.s32.totalorder %s88, %s89
      %p98 = scmp.eq.s32.totalorder %s15, 0
      %p99 = por %p97, %p98
      %p100 = scmp.ne.s32.totalorder %s88, %s89
      %p101 = scmp.eq.s32.totalorder %s16, 1
      %p102 = por %p100, %p101
      %p104 = scmp.ne.s32.totalorder %s89, %s103
      %p105 = scmp.eq.s32.totalorder %s16, 0
      %p106 = por %p104, %p105
      %p107 = scmp.le.s32.totalorder 1, %s10
      %p108 = scmp.lt.s32.totalorder %s10, 3
      %p109 = pnand %p107, %p108
      %p110 = pneg %p109
      // Predicated region
      $region9: #{tpu_custom_call.1} parent=5 // pred_check
        _
      $region10: #{tpu_custom_call.1} parent=5 // pred_check_branch
        %112 = sbr.rel (%p109) target = $region12
      $region11: #{tpu_custom_call.1} parent=5 // pred_region
        %s113 = ssub.s32 %s10, 1
        // Predicated region
        $region13: #{tpu_custom_call.1} parent=11 // pred_check
          %p114 = pneg %p57
        $region14: #{tpu_custom_call.1} parent=11 // pred_check_branch
          %116 = sbr.rel (%p114) target = $region16
        $region15: #{tpu_custom_call.1} parent=11 // pred_region
          _
        $region16: #{tpu_custom_call.1} parent=11 // pred_fallthru
          _
        // Predicated region
        $region17: #{tpu_custom_call.1} parent=11 // pred_check
          %p117 = pneg %p78
        $region18: #{tpu_custom_call.1} parent=11 // pred_check_branch
          %119 = sbr.rel (%p117) target = $region20
        $region19: #{tpu_custom_call.1} parent=11 // pred_region
          _
        $region20: #{tpu_custom_call.1} parent=11 // pred_fallthru
          _
      $region12: #{tpu_custom_call.1} parent=5 // pred_fallthru
        _
      %p120 = scmp.lt.s32.totalorder %s10, 2
      // Predicated region
      $region21: #{tpu_custom_call.1} parent=5 // pred_check
        %p121 = pneg %p120
      $region22: #{tpu_custom_call.1} parent=5 // pred_check_branch
        %123 = sbr.rel (%p121) target = $region24
      $region23: #{tpu_custom_call.1} parent=5 // pred_region
        // Predicated region
        $region25: #{tpu_custom_call.1} parent=23 // pred_check
          %p124 = pneg %p30
        $region26: #{tpu_custom_call.1} parent=23 // pred_check_branch
          %126 = sbr.rel (%p124) target = $region28
        $region27: #{tpu_custom_call.1} parent=23 // pred_region
          %s127 = smul.u32 16, %s10
          %p128 = scmp.lt.s32.totalorder %s127, 31
          %s129 = scalar_select %p128, %s127, 31
          %s130 = smul.addr %s129, 8
          %s131 = scalar_lea.vmem %s0, %s130
          %s132 = smul.u32 16, %s10
        $region28: #{tpu_custom_call.1} parent=23 // pred_fallthru
          _
      $region24: #{tpu_custom_call.1} parent=5 // pred_fallthru
        _
      %p133 = scmp.le.s32.totalorder 1, %s10
      %p134 = scmp.lt.s32.totalorder %s10, 3
      %p135 = pnand %p133, %p134
      %p136 = pneg %p135
      // Predicated region
      $region29: #{tpu_custom_call.1} parent=5 // pred_check
        _
      $region30: #{tpu_custom_call.1} parent=5 // pred_check_branch
        %138 = sbr.rel (%p135) target = $region32
      $region31: #{tpu_custom_call.1} parent=5 // pred_region
        %s139 = ssub.s32 %s10, 1
        %s140 = smul.u32 16, %s15
        %p141 = scmp.lt.s32.totalorder %s140, 31
        %s142 = scalar_select %p141, %s140, 31
        %s143 = smul.addr %s142, 8
        %s144 = scalar_lea.vmem %s0, %s143
        %p145 = pneg %p36
        %p146 = pneg %p33
        %p147 = pneg %p57
        %p148 = pneg %p54
        %p149 = pneg %p78
        %p150 = pneg %p75
        %p151 = pneg %p99
        %p152 = pneg %p96
        %s153 = smul.u32 16, %s15
        %p154 = scmp.lt.s32.totalorder %s153, 31
        %s155 = scalar_select %p154, %s153, 31
        %s156 = smul.addr %s155, 8
        %s157 = scalar_lea.vmem %s0, %s156
        %s158 = smul.u32 16, %s15
        %p159 = scmp.eq.s32.totalorder %s15, 0
        // Predicated region
        $region33: #{tpu_custom_call.1} parent=31 // pred_check
          %p160 = pneg %p159
        $region34: #{tpu_custom_call.1} parent=31 // pred_check_branch
          %162 = sbr.rel (%p160) target = $region36
        $region35: #{tpu_custom_call.1} parent=31 // pred_region
          %vm163 = vcmask 57344
          %164 = vst.msk [vmem:[#allocation2] sm:$0x1] %vm163, 0.0
        $region36: #{tpu_custom_call.1} parent=31 // pred_fallthru
          _
        %v165 = vld [vmem:[%s157] sm:$0xff]
        %v166 = vld [vmem:[%s157 + $0x8] sm:$0xff]
        %v167 = vld [vmem:[%s157 + $0x10] sm:$0xff]
        %v168 = vld [vmem:[%s157 + $0x18] sm:$0xff]
        %v169 = vld [vmem:[%s157 + $0x20] sm:$0xff]
        %v170 = vld [vmem:[%s157 + $0x28] sm:$0xff]
        %v171 = vld [vmem:[%s157 + $0x30] sm:$0xff]
        %v172 = vld [vmem:[%s157 + $0x38] sm:$0xff]
        %v173 = vld [vmem:[%s157 + $0x40] sm:$0xff]
        %v174 = vld [vmem:[%s157 + $0x48] sm:$0xff]
        %v175 = vld [vmem:[%s157 + $0x50] sm:$0xff]
        %v176 = vld [vmem:[%s157 + $0x58] sm:$0xff]
        %v177 = vld [vmem:[%s157 + $0x60] sm:$0xff]
        %v178 = vld [vmem:[%s157 + $0x68] sm:$0xff]
        %v179 = vld [vmem:[%s157 + $0x70] sm:$0xff]
        %v180 = vld [vmem:[%s157 + $0x78] sm:$0xff]
        %v181 = vld [vmem:[%s1] sm:$0xff]
        %v182 = vld [vmem:[%s1 + $0x8] sm:$0xff]
        %v183 = vld [vmem:[%s1 + $0x10] sm:$0xff]
        %v184 = vld [vmem:[%s1 + $0x18] sm:$0xff]
        %v185 = vld [vmem:[%s1 + $0x20] sm:$0xff]
        %v186 = vld [vmem:[%s1 + $0x28] sm:$0xff]
        %v187 = vld [vmem:[%s1 + $0x30] sm:$0xff]
        %v188 = vld [vmem:[%s1 + $0x38] sm:$0xff]
        %v189 = vld [vmem:[%s1 + $0x40] sm:$0xff]
        %v190 = vld [vmem:[%s1 + $0x48] sm:$0xff]
        %v191 = vld [vmem:[%s1 + $0x50] sm:$0xff]
        %v192 = vld [vmem:[%s1 + $0x58] sm:$0xff]
        %v193 = vld [vmem:[%s1 + $0x60] sm:$0xff]
        %v194 = vld [vmem:[%s1 + $0x68] sm:$0xff]
        %v195 = vld [vmem:[%s1 + $0x70] sm:$0xff]
        %v196 = vld [vmem:[%s1 + $0x78] sm:$0xff]
        %v197 = vld [vmem:[%s2] sm:$0x1]
        %v198 = vld [vmem:[%s2 + $0x1] sm:$0x1]
        %v199 = vld [vmem:[%s2 + $0x2] sm:$0x1]
        %v200 = vlaneseq
        %v201 = vshrl.u32 %v200, 7
        %v202 = vsub.s32 0, %v201
        %v203 = vrot.slane %v197, %v202
        %vm204 = vcmask 261120
        %v206 = vsel %vm204, %v165, 0
        %v209 = vsel %vm204, %v166, 0
        %v212 = vsel %vm204, %v167, 0
        %v215 = vsel %vm204, %v168, 0
        %v218 = vsel %vm204, %v169, 0
        %v221 = vsel %vm204, %v170, 0
        %v224 = vsel %vm204, %v171, 0
        %v227 = vsel %vm204, %v172, 0
        %v230 = vsel %vm204, %v173, 0
        %v233 = vsel %vm204, %v174, 0
        %v236 = vsel %vm204, %v175, 0
        %v239 = vsel %vm204, %v176, 0
        %v242 = vsel %vm204, %v177, 0
        %v245 = vsel %vm204, %v178, 0
        %v248 = vsel %vm204, %v179, 0
        %v251 = vsel %vm204, %v180, 0
        %253 = vmatprep.subr.mxu0 0.0
        %254 = vmatpush1.msra.mxu0 0.0
        %255 = vmatprep.subr.mxu0 0.0
        %256 = vmatpush1.msra.mxu0 0.0
        %257 = vmatprep.subr.mxu0 0.0
        %258 = vmatpush1.msra.mxu0 0.0
        %259 = vmatprep.subr.mxu0 0.0
        %260 = vmatpush1.msra.mxu0 0.0
        %261 = vmatprep.subr.mxu0 0.0
        %262 = vmatpush1.msra.mxu0 0.0
        %263 = vmatprep.subr.mxu0 0.0
        %264 = vmatpush1.msra.mxu0 0.0
        %265 = vmatprep.subr.mxu0 0.0
        %266 = vmatpush1.msra.mxu0 0.0
        %267 = vmatprep.subr.mxu0 0.0
        %268 = vmatpush1.msra.mxu0 0.0
        %269 = vmatprep.subr.mxu0 0.0
        %270 = vmatpush1.msra.mxu0 0.0
        %271 = vmatprep.subr.mxu0 0.0
        %272 = vmatpush1.msra.mxu0 0.0
        %273 = vmatprep.subr.mxu0 0.0
        %274 = vmatpush1.msra.mxu0 0.0
        %275 = vmatprep.subr.mxu0 0.0
        %276 = vmatpush1.msra.mxu0 0.0
        %277 = vmatprep.subr.mxu0 0.0
        %278 = vmatpush1.msra.mxu0 %v184
        %279 = vmatprep.subr.mxu0 0.0
        %280 = vmatpush1.msra.mxu0 %v183
        %281 = vmatprep.subr.mxu0 0.0
        %282 = vmatpush1.msra.mxu0 %v182
        %283 = vmatprep.subr.mxu0 0.0
        %284 = vmatpush1.msra.mxu0 %v181
        %285 = vmatprep.subr.mxu0 0.0
        %286 = vmatpush2.msra.mxu0 0.0
        %287 = vmatprep.subr.mxu0 0.0
        %288 = vmatpush2.msra.mxu0 0.0
        %289 = vmatprep.subr.mxu0 0.0
        %290 = vmatpush2.msra.mxu0 0.0
        %291 = vmatprep.subr.mxu0 0.0
        %292 = vmatpush2.msra.mxu0 0.0
        %293 = vmatprep.subr.mxu0 0.0
        %294 = vmatpush2.msra.mxu0 0.0
        %295 = vmatprep.subr.mxu0 0.0
        %296 = vmatpush2.msra.mxu0 0.0
        %297 = vmatprep.subr.mxu0 0.0
        %298 = vmatpush2.msra.mxu0 0.0
        %299 = vmatprep.subr.mxu0 0.0
        %300 = vmatpush2.msra.mxu0 0.0
        %301 = vmatprep.subr.mxu0 0.0
        %302 = vmatpush2.msra.mxu0 0.0
        %303 = vmatprep.subr.mxu0 0.0
        %304 = vmatpush2.msra.mxu0 0.0
        %305 = vmatprep.subr.mxu0 0.0
        %306 = vmatpush2.msra.mxu0 0.0
        %307 = vmatprep.subr.mxu0 0.0
        %308 = vmatpush2.msra.mxu0 0.0
        %309 = vmatprep.subr.mxu0 0.0
        %310 = vmatpush2.msra.mxu0 0.0
        %311 = vmatprep.subr.mxu0 0.0
        %312 = vmatpush2.msra.mxu0 0.0
        %313 = vmatprep.subr.mxu0 0.0
        %314 = vmatpush2.msra.mxu0 0.0
        %315 = vmatprep.subr.mxu0 0.0
        %316 = vmatpush2.msra.mxu0 0.0
        %317 = vmatprep.mubr.f32.mxu0 0.0
        %318 = vmatmul.mubr.f32.gmra.mxu0 %v206
        %v319 = vpop.f32.mrf.mxu0
        %v320 = vadd.f32 %v203, %v319
        %v321 = vpop.f32.mrf.mxu0
        %322 = vmatprep.mubr.f32.mxu0 0.0
        %323 = vmatmul.mubr.f32.gmra.mxu0 %v209
        %v324 = vpop.f32.mrf.mxu0
        %v325 = vadd.f32 %v203, %v324
        %v326 = vpop.f32.mrf.mxu0
        %327 = vmatprep.mubr.f32.mxu0 0.0
        %328 = vmatmul.mubr.f32.gmra.mxu0 %v212
        %v329 = vpop.f32.mrf.mxu0
        %v330 = vadd.f32 %v203, %v329
        %v331 = vpop.f32.mrf.mxu0
        %332 = vmatprep.mubr.f32.mxu0 0.0
        %333 = vmatmul.mubr.f32.gmra.mxu0 %v215
        %v334 = vpop.f32.mrf.mxu0
        %v335 = vadd.f32 %v203, %v334
        %v336 = vpop.f32.mrf.mxu0
        %337 = vmatprep.mubr.f32.mxu0 0.0
        %338 = vmatmul.mubr.f32.gmra.mxu0 %v218
        %v339 = vpop.f32.mrf.mxu0
        %v340 = vadd.f32 %v203, %v339
        %v341 = vpop.f32.mrf.mxu0
        %342 = vmatprep.mubr.f32.mxu0 0.0
        %343 = vmatmul.mubr.f32.gmra.mxu0 %v221
        %v344 = vpop.f32.mrf.mxu0
        %v345 = vadd.f32 %v203, %v344
        %v346 = vpop.f32.mrf.mxu0
        %347 = vmatprep.mubr.f32.mxu0 0.0
        %348 = vmatmul.mubr.f32.gmra.mxu0 %v224
        %v349 = vpop.f32.mrf.mxu0
        %v350 = vadd.f32 %v203, %v349
        %v351 = vpop.f32.mrf.mxu0
        %352 = vmatprep.mubr.f32.mxu0 0.0
        %353 = vmatmul.mubr.f32.gmra.mxu0 %v227
        %v354 = vpop.f32.mrf.mxu0
        %v355 = vadd.f32 %v203, %v354
        %v356 = vpop.f32.mrf.mxu0
        %357 = vmatprep.mubr.f32.mxu0 0.0
        %358 = vmatmul.mubr.f32.gmra.mxu0 %v230
        %v359 = vpop.f32.mrf.mxu0
        %v360 = vadd.f32 %v203, %v359
        %v361 = vpop.f32.mrf.mxu0
        %362 = vmatprep.mubr.f32.mxu0 0.0
        %363 = vmatmul.mubr.f32.gmra.mxu0 %v233
        %v364 = vpop.f32.mrf.mxu0
        %v365 = vadd.f32 %v203, %v364
        %v366 = vpop.f32.mrf.mxu0
        %367 = vmatprep.mubr.f32.mxu0 0.0
        %368 = vmatmul.mubr.f32.gmra.mxu0 %v236
        %v369 = vpop.f32.mrf.mxu0
        %v370 = vadd.f32 %v203, %v369
        %v371 = vpop.f32.mrf.mxu0
        %372 = vmatprep.mubr.f32.mxu0 0.0
        %373 = vmatmul.mubr.f32.gmra.mxu0 %v239
        %v374 = vpop.f32.mrf.mxu0
        %v375 = vadd.f32 %v203, %v374
        %v376 = vpop.f32.mrf.mxu0
        %377 = vmatprep.mubr.f32.mxu0 0.0
        %378 = vmatmul.mubr.f32.gmra.mxu0 %v242
        %v379 = vpop.f32.mrf.mxu0
        %v380 = vadd.f32 %v203, %v379
        %v381 = vpop.f32.mrf.mxu0
        %382 = vmatprep.mubr.f32.mxu0 0.0
        %383 = vmatmul.mubr.f32.gmra.mxu0 %v245
        %v384 = vpop.f32.mrf.mxu0
        %v385 = vadd.f32 %v203, %v384
        %v386 = vpop.f32.mrf.mxu0
        %387 = vmatprep.mubr.f32.mxu0 0.0
        %388 = vmatmul.mubr.f32.gmra.mxu0 %v248
        %v389 = vpop.f32.mrf.mxu0
        %v390 = vadd.f32 %v203, %v389
        %v391 = vpop.f32.mrf.mxu0
        %392 = vmatprep.mubr.f32.mxu0 0.0
        %393 = vmatmul.mubr.f32.gmra.mxu0 %v251
        %v394 = vpop.f32.mrf.mxu0
        %v395 = vadd.f32 %v203, %v394
        %v396 = vpop.f32.mrf.mxu0
        %397 = vdwg.mxu0
        %v398 = vmax.f32 %v320, 0.0
        %v399 = vmax.f32 %v325, 0.0
        %v400 = vmax.f32 %v330, 0.0
        %v401 = vmax.f32 %v335, 0.0
        %v402 = vmax.f32 %v340, 0.0
        %v403 = vmax.f32 %v345, 0.0
        %v404 = vmax.f32 %v350, 0.0
        %v405 = vmax.f32 %v355, 0.0
        %v406 = vmax.f32 %v360, 0.0
        %v407 = vmax.f32 %v365, 0.0
        %v408 = vmax.f32 %v370, 0.0
        %v409 = vmax.f32 %v375, 0.0
        %v410 = vmax.f32 %v380, 0.0
        %v411 = vmax.f32 %v385, 0.0
        %v412 = vmax.f32 %v390, 0.0
        %v413 = vmax.f32 %v395, 0.0
        %v414 = vlaneseq
        %v415 = vshrl.u32 %v414, 7
        %v416 = vsub.s32 0, %v415
        %v417 = vrot.slane %v198, %v416
        %vm418 = vcmask 523264
        %v420 = vsel %vm418, %v398, 0
        %v423 = vsel %vm418, %v399, 0
        %v426 = vsel %vm418, %v400, 0
        %v429 = vsel %vm418, %v401, 0
        %v432 = vsel %vm418, %v402, 0
        %v435 = vsel %vm418, %v403, 0
        %v438 = vsel %vm418, %v404, 0
        %v441 = vsel %vm418, %v405, 0
        %v444 = vsel %vm418, %v406, 0
        %v447 = vsel %vm418, %v407, 0
        %v450 = vsel %vm418, %v408, 0
        %v453 = vsel %vm418, %v409, 0
        %v456 = vsel %vm418, %v410, 0
        %v459 = vsel %vm418, %v411, 0
        %v462 = vsel %vm418, %v412, 0
        %v465 = vsel %vm418, %v413, 0
        %467 = vmatprep.subr.mxu0 0.0
        %468 = vmatpush1.msra.mxu0 0.0
        %469 = vmatprep.subr.mxu0 0.0
        %470 = vmatpush1.msra.mxu0 0.0
        %471 = vmatprep.subr.mxu0 0.0
        %472 = vmatpush1.msra.mxu0 0.0
        %473 = vmatprep.subr.mxu0 0.0
        %474 = vmatpush1.msra.mxu0 0.0
        %475 = vmatprep.subr.mxu0 0.0
        %476 = vmatpush1.msra.mxu0 0.0
        %477 = vmatprep.subr.mxu0 0.0
        %478 = vmatpush1.msra.mxu0 0.0
        %479 = vmatprep.subr.mxu0 0.0
        %480 = vmatpush1.msra.mxu0 0.0
        %481 = vmatprep.subr.mxu0 0.0
        %482 = vmatpush1.msra.mxu0 0.0
        %483 = vmatprep.subr.mxu0 0.0
        %484 = vmatpush1.msra.mxu0 %v192
        %485 = vmatprep.subr.mxu0 0.0
        %486 = vmatpush1.msra.mxu0 %v191
        %487 = vmatprep.subr.mxu0 0.0
        %488 = vmatpush1.msra.mxu0 %v190
        %489 = vmatprep.subr.mxu0 0.0
        %490 = vmatpush1.msra.mxu0 %v189
        %491 = vmatprep.subr.mxu0 0.0
        %492 = vmatpush1.msra.mxu0 %v188
        %493 = vmatprep.subr.mxu0 0.0
        %494 = vmatpush1.msra.mxu0 %v187
        %495 = vmatprep.subr.mxu0 0.0
        %496 = vmatpush1.msra.mxu0 %v186
        %497 = vmatprep.subr.mxu0 0.0
        %498 = vmatpush1.msra.mxu0 %v185
        %499 = vmatprep.subr.mxu0 0.0
        %500 = vmatpush2.msra.mxu0 0.0
        %501 = vmatprep.subr.mxu0 0.0
        %502 = vmatpush2.msra.mxu0 0.0
        %503 = vmatprep.subr.mxu0 0.0
        %504 = vmatpush2.msra.mxu0 0.0
        %505 = vmatprep.subr.mxu0 0.0
        %506 = vmatpush2.msra.mxu0 0.0
        %507 = vmatprep.subr.mxu0 0.0
        %508 = vmatpush2.msra.mxu0 0.0
        %509 = vmatprep.subr.mxu0 0.0
        %510 = vmatpush2.msra.mxu0 0.0
        %511 = vmatprep.subr.mxu0 0.0
        %512 = vmatpush2.msra.mxu0 0.0
        %513 = vmatprep.subr.mxu0 0.0
        %514 = vmatpush2.msra.mxu0 0.0
        %515 = vmatprep.subr.mxu0 0.0
        %516 = vmatpush2.msra.mxu0 0.0
        %517 = vmatprep.subr.mxu0 0.0
        %518 = vmatpush2.msra.mxu0 0.0
        %519 = vmatprep.subr.mxu0 0.0
        %520 = vmatpush2.msra.mxu0 0.0
        %521 = vmatprep.subr.mxu0 0.0
        %522 = vmatpush2.msra.mxu0 0.0
        %523 = vmatprep.subr.mxu0 0.0
        %524 = vmatpush2.msra.mxu0 0.0
        %525 = vmatprep.subr.mxu0 0.0
        %526 = vmatpush2.msra.mxu0 0.0
        %527 = vmatprep.subr.mxu0 0.0
        %528 = vmatpush2.msra.mxu0 0.0
        %529 = vmatprep.subr.mxu0 0.0
        %530 = vmatpush2.msra.mxu0 0.0
        %531 = vmatprep.mubr.f32.mxu0 0.0
        %532 = vmatmul.mubr.f32.gmra.mxu0 %v420
        %v533 = vpop.f32.mrf.mxu0
        %v534 = vadd.f32 %v417, %v533
        %v535 = vpop.f32.mrf.mxu0
        %536 = vmatprep.mubr.f32.mxu0 0.0
        %537 = vmatmul.mubr.f32.gmra.mxu0 %v423
        %v538 = vpop.f32.mrf.mxu0
        %v539 = vadd.f32 %v417, %v538
        %v540 = vpop.f32.mrf.mxu0
        %541 = vmatprep.mubr.f32.mxu0 0.0
        %542 = vmatmul.mubr.f32.gmra.mxu0 %v426
        %v543 = vpop.f32.mrf.mxu0
        %v544 = vadd.f32 %v417, %v543
        %v545 = vpop.f32.mrf.mxu0
        %546 = vmatprep.mubr.f32.mxu0 0.0
        %547 = vmatmul.mubr.f32.gmra.mxu0 %v429
        %v548 = vpop.f32.mrf.mxu0
        %v549 = vadd.f32 %v417, %v548
        %v550 = vpop.f32.mrf.mxu0
        %551 = vmatprep.mubr.f32.mxu0 0.0
        %552 = vmatmul.mubr.f32.gmra.mxu0 %v432
        %v553 = vpop.f32.mrf.mxu0
        %v554 = vadd.f32 %v417, %v553
        %v555 = vpop.f32.mrf.mxu0
        %556 = vmatprep.mubr.f32.mxu0 0.0
        %557 = vmatmul.mubr.f32.gmra.mxu0 %v435
        %v558 = vpop.f32.mrf.mxu0
        %v559 = vadd.f32 %v417, %v558
        %v560 = vpop.f32.mrf.mxu0
        %561 = vmatprep.mubr.f32.mxu0 0.0
        %562 = vmatmul.mubr.f32.gmra.mxu0 %v438
        %v563 = vpop.f32.mrf.mxu0
        %v564 = vadd.f32 %v417, %v563
        %v565 = vpop.f32.mrf.mxu0
        %566 = vmatprep.mubr.f32.mxu0 0.0
        %567 = vmatmul.mubr.f32.gmra.mxu0 %v441
        %v568 = vpop.f32.mrf.mxu0
        %v569 = vadd.f32 %v417, %v568
        %v570 = vpop.f32.mrf.mxu0
        %571 = vmatprep.mubr.f32.mxu0 0.0
        %572 = vmatmul.mubr.f32.gmra.mxu0 %v444
        %v573 = vpop.f32.mrf.mxu0
        %v574 = vadd.f32 %v417, %v573
        %v575 = vpop.f32.mrf.mxu0
        %576 = vmatprep.mubr.f32.mxu0 0.0
        %577 = vmatmul.mubr.f32.gmra.mxu0 %v447
        %v578 = vpop.f32.mrf.mxu0
        %v579 = vadd.f32 %v417, %v578
        %v580 = vpop.f32.mrf.mxu0
        %581 = vmatprep.mubr.f32.mxu0 0.0
        %582 = vmatmul.mubr.f32.gmra.mxu0 %v450
        %v583 = vpop.f32.mrf.mxu0
        %v584 = vadd.f32 %v417, %v583
        %v585 = vpop.f32.mrf.mxu0
        %586 = vmatprep.mubr.f32.mxu0 0.0
        %587 = vmatmul.mubr.f32.gmra.mxu0 %v453
        %v588 = vpop.f32.mrf.mxu0
        %v589 = vadd.f32 %v417, %v588
        %v590 = vpop.f32.mrf.mxu0
        %591 = vmatprep.mubr.f32.mxu0 0.0
        %592 = vmatmul.mubr.f32.gmra.mxu0 %v456
        %v593 = vpop.f32.mrf.mxu0
        %v594 = vadd.f32 %v417, %v593
        %v595 = vpop.f32.mrf.mxu0
        %596 = vmatprep.mubr.f32.mxu0 0.0
        %597 = vmatmul.mubr.f32.gmra.mxu0 %v459
        %v598 = vpop.f32.mrf.mxu0
        %v599 = vadd.f32 %v417, %v598
        %v600 = vpop.f32.mrf.mxu0
        %601 = vmatprep.mubr.f32.mxu0 0.0
        %602 = vmatmul.mubr.f32.gmra.mxu0 %v462
        %v603 = vpop.f32.mrf.mxu0
        %v604 = vadd.f32 %v417, %v603
        %v605 = vpop.f32.mrf.mxu0
        %606 = vmatprep.mubr.f32.mxu0 0.0
        %607 = vmatmul.mubr.f32.gmra.mxu0 %v465
        %v608 = vpop.f32.mrf.mxu0
        %v609 = vadd.f32 %v417, %v608
        %v610 = vpop.f32.mrf.mxu0
        %611 = vdwg.mxu0
        %v612 = vmax.f32 %v534, 0.0
        %v613 = vmax.f32 %v539, 0.0
        %v614 = vmax.f32 %v544, 0.0
        %v615 = vmax.f32 %v549, 0.0
        %v616 = vmax.f32 %v554, 0.0
        %v617 = vmax.f32 %v559, 0.0
        %v618 = vmax.f32 %v564, 0.0
        %v619 = vmax.f32 %v569, 0.0
        %v620 = vmax.f32 %v574, 0.0
        %v621 = vmax.f32 %v579, 0.0
        %v622 = vmax.f32 %v584, 0.0
        %v623 = vmax.f32 %v589, 0.0
        %v624 = vmax.f32 %v594, 0.0
        %v625 = vmax.f32 %v599, 0.0
        %v626 = vmax.f32 %v604, 0.0
        %v627 = vmax.f32 %v609, 0.0
        %v628 = vlaneseq
        %v629 = vshrl.u32 %v628, 7
        %v630 = vsub.s32 0, %v629
        %v631 = vrot.slane %v199, %v630
        %v633 = vsel %vm204, %v612, 0
        %v636 = vsel %vm204, %v613, 0
        %v639 = vsel %vm204, %v614, 0
        %v642 = vsel %vm204, %v615, 0
        %v645 = vsel %vm204, %v616, 0
        %v648 = vsel %vm204, %v617, 0
        %v651 = vsel %vm204, %v618, 0
        %v654 = vsel %vm204, %v619, 0
        %v657 = vsel %vm204, %v620, 0
        %v660 = vsel %vm204, %v621, 0
        %v663 = vsel %vm204, %v622, 0
        %v666 = vsel %vm204, %v623, 0
        %v669 = vsel %vm204, %v624, 0
        %v672 = vsel %vm204, %v625, 0
        %v675 = vsel %vm204, %v626, 0
        %v678 = vsel %vm204, %v627, 0
        %680 = vmatprep.subr.mxu0 0.0
        %681 = vmatpush1.msra.mxu0 0.0
        %682 = vmatprep.subr.mxu0 0.0
        %683 = vmatpush1.msra.mxu0 0.0
        %684 = vmatprep.subr.mxu0 0.0
        %685 = vmatpush1.msra.mxu0 0.0
        %686 = vmatprep.subr.mxu0 0.0
        %687 = vmatpush1.msra.mxu0 0.0
        %688 = vmatprep.subr.mxu0 0.0
        %689 = vmatpush1.msra.mxu0 0.0
        %690 = vmatprep.subr.mxu0 0.0
        %691 = vmatpush1.msra.mxu0 0.0
        %692 = vmatprep.subr.mxu0 0.0
        %693 = vmatpush1.msra.mxu0 0.0
        %694 = vmatprep.subr.mxu0 0.0
        %695 = vmatpush1.msra.mxu0 0.0
        %696 = vmatprep.subr.mxu0 0.0
        %697 = vmatpush1.msra.mxu0 0.0
        %698 = vmatprep.subr.mxu0 0.0
        %699 = vmatpush1.msra.mxu0 0.0
        %700 = vmatprep.subr.mxu0 0.0
        %701 = vmatpush1.msra.mxu0 0.0
        %702 = vmatprep.subr.mxu0 0.0
        %703 = vmatpush1.msra.mxu0 0.0
        %704 = vmatprep.subr.mxu0 0.0
        %705 = vmatpush1.msra.mxu0 %v196
        %706 = vmatprep.subr.mxu0 0.0
        %707 = vmatpush1.msra.mxu0 %v195
        %708 = vmatprep.subr.mxu0 0.0
        %709 = vmatpush1.msra.mxu0 %v194
        %710 = vmatprep.subr.mxu0 0.0
        %711 = vmatpush1.msra.mxu0 %v193
        %712 = vmatprep.subr.mxu0 0.0
        %713 = vmatpush2.msra.mxu0 0.0
        %714 = vmatprep.subr.mxu0 0.0
        %715 = vmatpush2.msra.mxu0 0.0
        %716 = vmatprep.subr.mxu0 0.0
        %717 = vmatpush2.msra.mxu0 0.0
        %718 = vmatprep.subr.mxu0 0.0
        %719 = vmatpush2.msra.mxu0 0.0
        %720 = vmatprep.subr.mxu0 0.0
        %721 = vmatpush2.msra.mxu0 0.0
        %722 = vmatprep.subr.mxu0 0.0
        %723 = vmatpush2.msra.mxu0 0.0
        %724 = vmatprep.subr.mxu0 0.0
        %725 = vmatpush2.msra.mxu0 0.0
        %726 = vmatprep.subr.mxu0 0.0
        %727 = vmatpush2.msra.mxu0 0.0
        %728 = vmatprep.subr.mxu0 0.0
        %729 = vmatpush2.msra.mxu0 0.0
        %730 = vmatprep.subr.mxu0 0.0
        %731 = vmatpush2.msra.mxu0 0.0
        %732 = vmatprep.subr.mxu0 0.0
        %733 = vmatpush2.msra.mxu0 0.0
        %734 = vmatprep.subr.mxu0 0.0
        %735 = vmatpush2.msra.mxu0 0.0
        %736 = vmatprep.subr.mxu0 0.0
        %737 = vmatpush2.msra.mxu0 0.0
        %738 = vmatprep.subr.mxu0 0.0
        %739 = vmatpush2.msra.mxu0 0.0
        %740 = vmatprep.subr.mxu0 0.0
        %741 = vmatpush2.msra.mxu0 0.0
        %742 = vmatprep.subr.mxu0 0.0
        %743 = vmatpush2.msra.mxu0 0.0
        %744 = vmatprep.mubr.f32.mxu0 0.0
        %745 = vmatmul.mubr.f32.gmra.mxu0 %v633
        %v746 = vpop.f32.mrf.mxu0
        %v747 = vadd.f32 %v631, %v746
        %v748 = vpop.f32.mrf.mxu0
        %749 = vmatprep.mubr.f32.mxu0 0.0
        %750 = vmatmul.mubr.f32.gmra.mxu0 %v636
        %v751 = vpop.f32.mrf.mxu0
        %v752 = vadd.f32 %v631, %v751
        %v753 = vpop.f32.mrf.mxu0
        %754 = vmatprep.mubr.f32.mxu0 0.0
        %755 = vmatmul.mubr.f32.gmra.mxu0 %v639
        %v756 = vpop.f32.mrf.mxu0
        %v757 = vadd.f32 %v631, %v756
        %v758 = vpop.f32.mrf.mxu0
        %759 = vmatprep.mubr.f32.mxu0 0.0
        %760 = vmatmul.mubr.f32.gmra.mxu0 %v642
        %v761 = vpop.f32.mrf.mxu0
        %v762 = vadd.f32 %v631, %v761
        %v763 = vpop.f32.mrf.mxu0
        %764 = vmatprep.mubr.f32.mxu0 0.0
        %765 = vmatmul.mubr.f32.gmra.mxu0 %v645
        %v766 = vpop.f32.mrf.mxu0
        %v767 = vadd.f32 %v631, %v766
        %v768 = vpop.f32.mrf.mxu0
        %769 = vmatprep.mubr.f32.mxu0 0.0
        %770 = vmatmul.mubr.f32.gmra.mxu0 %v648
        %v771 = vpop.f32.mrf.mxu0
        %v772 = vadd.f32 %v631, %v771
        %v773 = vpop.f32.mrf.mxu0
        %774 = vmatprep.mubr.f32.mxu0 0.0
        %775 = vmatmul.mubr.f32.gmra.mxu0 %v651
        %v776 = vpop.f32.mrf.mxu0
        %v777 = vadd.f32 %v631, %v776
        %v778 = vpop.f32.mrf.mxu0
        %779 = vmatprep.mubr.f32.mxu0 0.0
        %780 = vmatmul.mubr.f32.gmra.mxu0 %v654
        %v781 = vpop.f32.mrf.mxu0
        %v782 = vadd.f32 %v631, %v781
        %v783 = vpop.f32.mrf.mxu0
        %784 = vmatprep.mubr.f32.mxu0 0.0
        %785 = vmatmul.mubr.f32.gmra.mxu0 %v657
        %v786 = vpop.f32.mrf.mxu0
        %v787 = vadd.f32 %v631, %v786
        %v788 = vpop.f32.mrf.mxu0
        %789 = vmatprep.mubr.f32.mxu0 0.0
        %790 = vmatmul.mubr.f32.gmra.mxu0 %v660
        %v791 = vpop.f32.mrf.mxu0
        %v792 = vadd.f32 %v631, %v791
        %v793 = vpop.f32.mrf.mxu0
        %794 = vmatprep.mubr.f32.mxu0 0.0
        %795 = vmatmul.mubr.f32.gmra.mxu0 %v663
        %v796 = vpop.f32.mrf.mxu0
        %v797 = vadd.f32 %v631, %v796
        %v798 = vpop.f32.mrf.mxu0
        %799 = vmatprep.mubr.f32.mxu0 0.0
        %800 = vmatmul.mubr.f32.gmra.mxu0 %v666
        %v801 = vpop.f32.mrf.mxu0
        %v802 = vadd.f32 %v631, %v801
        %v803 = vpop.f32.mrf.mxu0
        %804 = vmatprep.mubr.f32.mxu0 0.0
        %805 = vmatmul.mubr.f32.gmra.mxu0 %v669
        %v806 = vpop.f32.mrf.mxu0
        %v807 = vadd.f32 %v631, %v806
        %v808 = vpop.f32.mrf.mxu0
        %809 = vmatprep.mubr.f32.mxu0 0.0
        %810 = vmatmul.mubr.f32.gmra.mxu0 %v672
        %v811 = vpop.f32.mrf.mxu0
        %v812 = vadd.f32 %v631, %v811
        %v813 = vpop.f32.mrf.mxu0
        %814 = vmatprep.mubr.f32.mxu0 0.0
        %815 = vmatmul.mubr.f32.gmra.mxu0 %v675
        %v816 = vpop.f32.mrf.mxu0
        %v817 = vadd.f32 %v631, %v816
        %v818 = vpop.f32.mrf.mxu0
        %819 = vmatprep.mubr.f32.mxu0 0.0
        %820 = vmatmul.mubr.f32.gmra.mxu0 %v678
        %v821 = vpop.f32.mrf.mxu0
        %v822 = vadd.f32 %v631, %v821
        %v823 = vpop.f32.mrf.mxu0
        %824 = vdwg.mxu0
        %v825 = vmax.f32 %v747, 0.0
        %v826 = vmax.f32 %v752, 0.0
        %v827 = vmax.f32 %v757, 0.0
        %v828 = vmax.f32 %v762, 0.0
        %v829 = vmax.f32 %v767, 0.0
        %v830 = vmax.f32 %v772, 0.0
        %v831 = vmax.f32 %v777, 0.0
        %v832 = vmax.f32 %v782, 0.0
        %v833 = vmax.f32 %v787, 0.0
        %v834 = vmax.f32 %v792, 0.0
        %v835 = vmax.f32 %v797, 0.0
        %v836 = vmax.f32 %v802, 0.0
        %v837 = vmax.f32 %v807, 0.0
        %v838 = vmax.f32 %v812, 0.0
        %v839 = vmax.f32 %v817, 0.0
        %v840 = vmax.f32 %v822, 0.0
        %v841 = vld [vmem:[#allocation2] sm:$0x1]
        %vm842 = vcmask 64512
        %v843 = vsel %vm842, %v825, 0.0
        %v844 = vsel %vm842, %v826, 0.0
        %v845 = vadd.f32 %v843, %v844
        %v846 = vsel %vm842, %v827, 0.0
        %v847 = vadd.f32 %v845, %v846
        %v848 = vsel %vm842, %v828, 0.0
        %v849 = vadd.f32 %v847, %v848
        %v850 = vsel %vm842, %v829, 0.0
        %v851 = vadd.f32 %v849, %v850
        %v852 = vsel %vm842, %v830, 0.0
        %v853 = vadd.f32 %v851, %v852
        %v854 = vsel %vm842, %v831, 0.0
        %v855 = vadd.f32 %v853, %v854
        %v856 = vsel %vm842, %v832, 0.0
        %v857 = vadd.f32 %v855, %v856
        %v858 = vsel %vm842, %v833, 0.0
        %v859 = vadd.f32 %v857, %v858
        %v860 = vsel %vm842, %v834, 0.0
        %v861 = vadd.f32 %v859, %v860
        %v862 = vsel %vm842, %v835, 0.0
        %v863 = vadd.f32 %v861, %v862
        %v864 = vsel %vm842, %v836, 0.0
        %v865 = vadd.f32 %v863, %v864
        %v866 = vsel %vm842, %v837, 0.0
        %v867 = vadd.f32 %v865, %v866
        %v868 = vsel %vm842, %v838, 0.0
        %v869 = vadd.f32 %v867, %v868
        %v870 = vsel %vm842, %v839, 0.0
        %v871 = vadd.f32 %v869, %v870
        %v872 = vsel %vm842, %v840, 0.0
        %v873 = vadd.f32 %v871, %v872
        %v874 = vrot.slane %v873, 4
        %v875 = vadd.f32 %v873, %v874
        %v876 = vrot.slane %v875, 2
        %v877 = vadd.f32 %v875, %v876
        %v878 = vrot.slane %v877, 1
        %v879 = vadd.f32 %v877, %v878
        %v880 = vadd.f32 %v841, %v879
        %vm881 = vcmask 57344
        %882 = vst.msk [vmem:[#allocation2] sm:$0x1] %vm881, %v880
        %p883 = scmp.eq.s32.totalorder %s15, 1
        // Predicated region
        $region37: #{tpu_custom_call.1} parent=31 // pred_check
          %p884 = pneg %p883
        $region38: #{tpu_custom_call.1} parent=31 // pred_check_branch
          %886 = sbr.rel (%p884) target = $region40
        $region39: #{tpu_custom_call.1} parent=31 // pred_region
          %v887 = vld [vmem:[#allocation2] sm:$0x1]
          %v888 = vmul.f32 %v887, 0.00390625
          %v889 = vsel %vm881, %v888, -inf
          %890 = vmax.xlane.f32.xlu0 %v889
          %v891 = vpop.xlane.xlu0 %890
          %v892 = vsub.f32 %v888, %v891
          %v893 = vmul.f32 %v892, 1.442695
          %v894 = vpow.pop %v893
          %v895 = vsel %vm881, %v894, 0.0
          %896 = vadd.xlane.f32.xlu0 %v895
          %v897 = vpop.xlane.xlu0 %896
          %v898 = vrcp.pop %v897
          %v899 = vmul.f32 %v897, %v898
          %v900 = vsub.f32 2.0, %v899
          %v901 = vmul.f32 %v898, %v900
          %v902 = vmul.f32 %v894, %v901
          %903 = vst.msk [vmem:[#allocation2] sm:$0x1] %vm881, %v902
        $region40: #{tpu_custom_call.1} parent=31 // pred_fallthru
          _
        // Predicated region
        $region41: #{tpu_custom_call.1} parent=31 // pred_check
          %p904 = pneg %p96
        $region42: #{tpu_custom_call.1} parent=31 // pred_check_branch
          %906 = sbr.rel (%p904) target = $region44
        $region43: #{tpu_custom_call.1} parent=31 // pred_region
          %s908 = ssub.s32 16, 16
          %909 = vsyncadd [#allocation3], %s908
          %s911 = sshll.u32 [#allocation2], 4
          %s912 = int_to_ptr.vmem [resolvable:$true] %s911
          %914 = dma.vmem_to_hbm [thread:$0]  %s912, 16, %s3, [#allocation3]
        $region44: #{tpu_custom_call.1} parent=31 // pred_fallthru
          _
        // Predicated region
        $region45: #{tpu_custom_call.1} parent=31 // pred_check
          %p915 = pneg %p96
        $region46: #{tpu_custom_call.1} parent=31 // pred_check_branch
          %917 = sbr.rel (%p915) target = $region48
        $region47: #{tpu_custom_call.1} parent=31 // pred_region
          %918 = dma.done [#allocation3], 16
        $region48: #{tpu_custom_call.1} parent=31 // pred_fallthru
          _
      $region32: #{tpu_custom_call.1} parent=5 // pred_fallthru
        _
      %p919 = scmp.le.s32.totalorder 2, %s10
      // Predicated region
      $region49: #{tpu_custom_call.1} parent=5 // pred_check
        %p920 = pneg %p919
      $region50: #{tpu_custom_call.1} parent=5 // pred_check_branch
        %922 = sbr.rel (%p920) target = $region52
      $region51: #{tpu_custom_call.1} parent=5 // pred_region
        %s923 = ssub.s32 %s10, 2
      $region52: #{tpu_custom_call.1} parent=5 // pred_fallthru
        _
    $region6: #{tpu_custom_call.1} parent=1 // loop_footer
      %s14 = sadd.s32 1, %s10
    $region7: #{tpu_custom_call.1} parent=1 // loop_footer_branch
      %9 = sbr.rel target = $region3
    $region8: #{tpu_custom_call.1} parent=1 // loop_exit
      _
    %924 = vsyncpa [#allocation3], 1
    %s925 = scalar_lea.sflag [#allocation3], 1
    %926 = vsyncpa %s925, 1

</llo_original>
